<compile_context>
chip_gen: v5e
topology: v5e:2x2
jax: 0.10.0
libtpu: 0.0.40
codegen_flags: <defaults>
</compile_context>

<pallas_src>
import functools

import jax
import jax.numpy as jnp
from jax.experimental import pallas as pl
from jax.experimental.pallas import tpu as pltpu


def _round_up(x, m):
    return (x + m - 1) // m * m


def _dil_conv_kernel(x_ref, dww_ref, pww_ref, scale_ref, bias_ref, o_ref, *,
                     kernel_size, w_pad, acc_len):
    """One DilConv block (ReLU -> depthwise -> pointwise -> BN) for one sample.

    x_ref:    (1, C_in, Lp)     zero-padded sample, spatial flattened (lanes)
    dww_ref:  (C_in, K*K)       depthwise weights
    pww_ref:  (C_out, C_in)     pointwise (1x1) weights
    scale_ref, bias_ref: (C_out, 1)  folded BatchNorm scale / bias
    o_ref:    (1, C_out, acc_len)
    """
    x = jnp.maximum(x_ref[0].astype(jnp.float32), 0.0)   # ReLU (zero pad stays 0)
    dww = dww_ref[...].astype(jnp.float32)

    # Depthwise conv: K*K statically unrolled shifted-slice FMAs.
    # acc[c, i*W_pad + j] = sum_{kh,kw} w[c,kh,kw] * x[c, (i+kh)*W_pad + (j+kw)]
    # (columns j >= W_out of each row are garbage and dropped in the wrapper)
    acc = jnp.zeros((x.shape[0], acc_len), dtype=jnp.float32)
    for kh in range(kernel_size):
        for kw in range(kernel_size):
            t = kh * kernel_size + kw
            off = kh * w_pad + kw
            tap = x[:, off:off + acc_len]                 # static slice
            acc = acc + tap * dww[:, t:t + 1]             # (C_in,1) lane broadcast

    # Pointwise 1x1 conv on the MXU + folded BatchNorm (scale/bias broadcast).
    out = jnp.dot(pww_ref[...].astype(jnp.float32), acc,
                  preferred_element_type=jnp.float32)     # (C_out, acc_len)
    out = out * scale_ref[...] + bias_ref[...]
    o_ref[0] = out.astype(o_ref.dtype)


def dil_conv(x, dw_w, pw_w, gamma, beta, mean, var, *,
             kernel_size, stride, padding, eps=1e-5):
    """DilConv forward: ReLU -> depthwise conv -> 1x1 conv -> BN (inference)."""
    n, c_in, h, w = x.shape
    c_out = pw_w.shape[0]
    k = kernel_size
    h_pad, w_pad = h + 2 * padding, w + 2 * padding
    h_full, w_full = h_pad - k + 1, w_pad - k + 1         # stride-1 output size

    # lane-dense flattened layout (both padded to multiples of 128)
    acc_len = _round_up(h_full * w_pad, 128)
    lp = _round_up((k - 1) * (w_pad + 1) + acc_len, 128)

    x_pad = jnp.pad(x, ((0, 0), (0, 0), (padding, padding), (padding, padding)))
    x_flat = x_pad.reshape(n, c_in, h_pad * w_pad)
    x_flat = jnp.pad(x_flat, ((0, 0), (0, 0), (0, lp - h_pad * w_pad)))

    inv_std = 1.0 / jnp.sqrt(var.astype(jnp.float32) + eps)
    scale = (gamma.astype(jnp.float32) * inv_std).reshape(c_out, 1)
    bias = (beta.astype(jnp.float32)
            - mean.astype(jnp.float32) * gamma.astype(jnp.float32) * inv_std
            ).reshape(c_out, 1)

    dw_flat = dw_w.reshape(c_in, k * k).astype(jnp.float32)
    pw_2d = pw_w.reshape(c_out, c_in).astype(jnp.float32)

    kernel = functools.partial(_dil_conv_kernel, kernel_size=k,
                               w_pad=w_pad, acc_len=acc_len)

    out_flat = pl.pallas_call(
        kernel,
        out_shape=jax.ShapeDtypeStruct((n, c_out, acc_len), x.dtype),
        grid_spec=pltpu.PrefetchScalarGridSpec(
            num_scalar_prefetch=0,
            grid=(n,),
            in_specs=[
                pl.BlockSpec((1, c_in, lp), lambda b: (b, 0, 0)),
                pl.BlockSpec((c_in, k * k), lambda b: (0, 0)),
                pl.BlockSpec((c_out, c_in), lambda b: (0, 0)),
                pl.BlockSpec((c_out, 1), lambda b: (0, 0)),
                pl.BlockSpec((c_out, 1), lambda b: (0, 0)),
            ],
            out_specs=pl.BlockSpec((1, c_out, acc_len), lambda b: (b, 0, 0)),
        ),
        compiler_params=pltpu.CompilerParams(
            dimension_semantics=("parallel",),   # batch samples are independent
        ),
    )(x_flat, dw_flat, pw_2d, scale, bias)

    # Un-flatten, drop the garbage columns, then apply stride by subsampling
    # (pointwise conv + BN are per-pixel, so this equals a strided depthwise).
    out = out_flat[:, :, :h_full * w_pad].reshape(n, c_out, h_full, w_pad)
    out = out[:, :, :, :w_full]
    if stride > 1:
        out = out[:, :, ::stride, ::stride]
    return out


def sep_conv(x, params, *, kernel_size, stride, padding):
    """SepConv forward = DilConv(C_in->C_in, stride) then DilConv(C_in->C_out, 1)."""
    p1, p2 = params
    y = dil_conv(x, *p1, kernel_size=kernel_size, stride=stride, padding=padding)
    y = dil_conv(y, *p2, kernel_size=kernel_size, stride=1, padding=padding)
    return y


# ---------------- pure-JAX reference (for correctness checking) ----------------

def _dil_conv_ref(x, dw_w, pw_w, gamma, beta, mean, var, *,
                  kernel_size, stride, padding, eps=1e-5):
    c_in = x.shape[1]
    c_out = pw_w.shape[0]
    k = kernel_size
    y = jnp.maximum(x, 0.0)
    y = jax.lax.conv_general_dilated(
        y, dw_w.reshape(c_in, 1, k, k),
        window_strides=(stride, stride),
        padding=[(padding, padding), (padding, padding)],
        dimension_numbers=("NCHW", "OIHW", "NCHW"),
        feature_group_count=c_in)
    y = jax.lax.conv_general_dilated(
        y, pw_w.reshape(c_out, c_in, 1, 1),
        window_strides=(1, 1), padding=[(0, 0), (0, 0)],
        dimension_numbers=("NCHW", "OIHW", "NCHW"))
    scale = gamma / jnp.sqrt(var + eps)
    return (y * scale[None, :, None, None]
            + (beta - mean * scale)[None, :, None, None])


def _sep_conv_ref(x, params, *, kernel_size, stride, padding):
    p1, p2 = params
    y = _dil_conv_ref(x, *p1, kernel_size=kernel_size, stride=stride, padding=padding)
    y = _dil_conv_ref(y, *p2, kernel_size=kernel_size, stride=1, padding=padding)
    return y


if __name__ == "__main__":
    key = jax.random.PRNGKey(0)
    n, c_in, c_out, h, w = 2, 4, 8, 16, 16
    k_size, stride, padding = 3, 1, 1

    keys = jax.random.split(key, 13)
    x = jax.random.normal(keys[0], (n, c_in, h, w), dtype=jnp.float32)

    def make_block_params(ks, cin, cout):
        dw = 0.3 * jax.random.normal(ks[0], (cin, k_size, k_size), jnp.float32)
        pw = 0.3 * jax.random.normal(ks[1], (cout, cin), jnp.float32)
        g = jax.random.uniform(ks[2], (cout,), jnp.float32, 0.5, 1.5)
        b = 0.1 * jax.random.normal(ks[3], (cout,), jnp.float32)
        m = 0.1 * jax.random.normal(ks[4], (cout,), jnp.float32)
        v = jax.random.uniform(ks[5], (cout,), jnp.float32, 0.5, 1.5)
        return (dw, pw, g, b, m, v)

    p1 = make_block_params(keys[1:7], c_in, c_in)      # DilConv 1: C_in -> C_in
    p2 = make_block_params(keys[7:13], c_in, c_out)    # DilConv 2: C_in -> C_out
    params = (p1, p2)

    # stride=1 SepConv
    y = sep_conv(x, params, kernel_size=k_size, stride=stride, padding=padding)
    y = jax.block_until_ready(y)
    y_ref = _sep_conv_ref(x, params, kernel_size=k_size, stride=stride,
                          padding=padding)
    ok = (y.shape == y_ref.shape) and bool(
        jnp.allclose(y, y_ref, atol=1e-2, rtol=1e-2))

    # also exercise the strided path (first DilConv with stride=2)
    y2 = sep_conv(x, params, kernel_size=k_size, stride=2, padding=padding)
    y2 = jax.block_until_ready(y2)
    y2_ref = _sep_conv_ref(x, params, kernel_size=k_size, stride=2,
                           padding=padding)
    ok = ok and (y2.shape == y2_ref.shape) and bool(
        jnp.allclose(y2, y2_ref, atol=1e-2, rtol=1e-2))

    if ok:
        print("KERNEL_OK")
    else:
        raise SystemExit("mismatch between Pallas SepConv and JAX reference")
</pallas_src>

<mosaic_0001>
module attributes {stable_mosaic.version = 11 : i64} {
  func.func @_dil_conv_kernel(%arg0: i32, %arg1: memref<1x4x512xf32, #tpu.memory_space<vmem>>, %arg2: memref<4x9xf32, #tpu.memory_space<vmem>>, %arg3: memref<4x4xf32, #tpu.memory_space<vmem>>, %arg4: memref<4x1xf32, #tpu.memory_space<vmem>>, %arg5: memref<4x1xf32, #tpu.memory_space<vmem>>, %arg6: memref<1x4x384xf32, #tpu.memory_space<vmem>>) attributes {dimension_semantics = [#tpu.dimension_semantics<parallel>], iteration_bounds = array<i64: 2>, scalar_prefetch = 0 : i64, scratch_operands = 0 : i64, tpu.core_type = #tpu.core_type<tc>, window_params = [{transform_indices = @transform_0, window_bounds = array<i64: 1, 4, 512>}, {pipeline_mode = #tpu.pipeline_mode<synchronous>, transform_indices = @transform_1, window_bounds = array<i64: 4, 9>}, {pipeline_mode = #tpu.pipeline_mode<synchronous>, transform_indices = @transform_2, window_bounds = array<i64: 4, 4>}, {pipeline_mode = #tpu.pipeline_mode<synchronous>, transform_indices = @transform_3, window_bounds = array<i64: 4, 1>}, {pipeline_mode = #tpu.pipeline_mode<synchronous>, transform_indices = @transform_4, window_bounds = array<i64: 4, 1>}, {transform_indices = @transform_5, window_bounds = array<i64: 1, 4, 384>}]} {
    %c0 = arith.constant 0 : index
    %c0_0 = arith.constant 0 : index
    %c0_1 = arith.constant 0 : index
    %0 = vector.load %arg1[%c0, %c0_0, %c0_1] : memref<1x4x512xf32, #tpu.memory_space<vmem>>, vector<1x4x512xf32>
    %1 = vector.shape_cast %0 : vector<1x4x512xf32> to vector<4x512xf32>
    %cst = arith.constant 0.000000e+00 : f32
    %2 = vector.broadcast %cst : f32 to vector<4x512xf32>
    %3 = arith.maximumf %1, %2 : vector<4x512xf32>
    %c0_2 = arith.constant 0 : index
    %c0_3 = arith.constant 0 : index
    %4 = vector.load %arg2[%c0_2, %c0_3] : memref<4x9xf32, #tpu.memory_space<vmem>>, vector<4x9xf32>
    %cst_4 = arith.constant 0.000000e+00 : f32
    %5 = vector.broadcast %cst_4 : f32 to vector<4x384xf32>
    %6 = vector.extract_strided_slice %3 {offsets = [0, 0], sizes = [4, 384], strides = [1, 1]} : vector<4x512xf32> to vector<4x384xf32>
    %7 = vector.extract_strided_slice %4 {offsets = [0, 0], sizes = [4, 1], strides = [1, 1]} : vector<4x9xf32> to vector<4x1xf32>
    %8 = vector.broadcast %7 : vector<4x1xf32> to vector<4x384xf32>
    %9 = arith.mulf %6, %8 : vector<4x384xf32>
    %10 = arith.addf %5, %9 : vector<4x384xf32>
    %11 = vector.extract_strided_slice %3 {offsets = [0, 1], sizes = [4, 384], strides = [1, 1]} : vector<4x512xf32> to vector<4x384xf32>
    %12 = vector.extract_strided_slice %4 {offsets = [0, 1], sizes = [4, 1], strides = [1, 1]} : vector<4x9xf32> to vector<4x1xf32>
    %13 = vector.broadcast %12 : vector<4x1xf32> to vector<4x384xf32>
    %14 = arith.mulf %11, %13 : vector<4x384xf32>
    %15 = arith.addf %10, %14 : vector<4x384xf32>
    %16 = vector.extract_strided_slice %3 {offsets = [0, 2], sizes = [4, 384], strides = [1, 1]} : vector<4x512xf32> to vector<4x384xf32>
    %17 = vector.extract_strided_slice %4 {offsets = [0, 2], sizes = [4, 1], strides = [1, 1]} : vector<4x9xf32> to vector<4x1xf32>
    %18 = vector.broadcast %17 : vector<4x1xf32> to vector<4x384xf32>
    %19 = arith.mulf %16, %18 : vector<4x384xf32>
    %20 = arith.addf %15, %19 : vector<4x384xf32>
    %21 = vector.extract_strided_slice %3 {offsets = [0, 18], sizes = [4, 384], strides = [1, 1]} : vector<4x512xf32> to vector<4x384xf32>
    %22 = vector.extract_strided_slice %4 {offsets = [0, 3], sizes = [4, 1], strides = [1, 1]} : vector<4x9xf32> to vector<4x1xf32>
    %23 = vector.broadcast %22 : vector<4x1xf32> to vector<4x384xf32>
    %24 = arith.mulf %21, %23 : vector<4x384xf32>
    %25 = arith.addf %20, %24 : vector<4x384xf32>
    %26 = vector.extract_strided_slice %3 {offsets = [0, 19], sizes = [4, 384], strides = [1, 1]} : vector<4x512xf32> to vector<4x384xf32>
    %27 = vector.extract_strided_slice %4 {offsets = [0, 4], sizes = [4, 1], strides = [1, 1]} : vector<4x9xf32> to vector<4x1xf32>
    %28 = vector.broadcast %27 : vector<4x1xf32> to vector<4x384xf32>
    %29 = arith.mulf %26, %28 : vector<4x384xf32>
    %30 = arith.addf %25, %29 : vector<4x384xf32>
    %31 = vector.extract_strided_slice %3 {offsets = [0, 20], sizes = [4, 384], strides = [1, 1]} : vector<4x512xf32> to vector<4x384xf32>
    %32 = vector.extract_strided_slice %4 {offsets = [0, 5], sizes = [4, 1], strides = [1, 1]} : vector<4x9xf32> to vector<4x1xf32>
    %33 = vector.broadcast %32 : vector<4x1xf32> to vector<4x384xf32>
    %34 = arith.mulf %31, %33 : vector<4x384xf32>
    %35 = arith.addf %30, %34 : vector<4x384xf32>
    %36 = vector.extract_strided_slice %3 {offsets = [0, 36], sizes = [4, 384], strides = [1, 1]} : vector<4x512xf32> to vector<4x384xf32>
    %37 = vector.extract_strided_slice %4 {offsets = [0, 6], sizes = [4, 1], strides = [1, 1]} : vector<4x9xf32> to vector<4x1xf32>
    %38 = vector.broadcast %37 : vector<4x1xf32> to vector<4x384xf32>
    %39 = arith.mulf %36, %38 : vector<4x384xf32>
    %40 = arith.addf %35, %39 : vector<4x384xf32>
    %41 = vector.extract_strided_slice %3 {offsets = [0, 37], sizes = [4, 384], strides = [1, 1]} : vector<4x512xf32> to vector<4x384xf32>
    %42 = vector.extract_strided_slice %4 {offsets = [0, 7], sizes = [4, 1], strides = [1, 1]} : vector<4x9xf32> to vector<4x1xf32>
    %43 = vector.broadcast %42 : vector<4x1xf32> to vector<4x384xf32>
    %44 = arith.mulf %41, %43 : vector<4x384xf32>
    %45 = arith.addf %40, %44 : vector<4x384xf32>
    %46 = vector.extract_strided_slice %3 {offsets = [0, 38], sizes = [4, 384], strides = [1, 1]} : vector<4x512xf32> to vector<4x384xf32>
    %47 = vector.extract_strided_slice %4 {offsets = [0, 8], sizes = [4, 1], strides = [1, 1]} : vector<4x9xf32> to vector<4x1xf32>
    %48 = vector.broadcast %47 : vector<4x1xf32> to vector<4x384xf32>
    %49 = arith.mulf %46, %48 : vector<4x384xf32>
    %50 = arith.addf %45, %49 : vector<4x384xf32>
    %c0_5 = arith.constant 0 : index
    %c0_6 = arith.constant 0 : index
    %51 = vector.load %arg3[%c0_5, %c0_6] : memref<4x4xf32, #tpu.memory_space<vmem>>, vector<4x4xf32>
    %cst_7 = arith.constant dense<0.000000e+00> : vector<4x384xf32>
    %52 = tpu.matmul %51, %50, %cst_7 {dimension_numbers = #tpu.dot_dimension_numbers<[1], [0], [0], [1], [0, 0, 1, 1], [], []>} : vector<4x4xf32>, vector<4x384xf32>, vector<4x384xf32> -> vector<4x384xf32>
    %c0_8 = arith.constant 0 : index
    %c0_9 = arith.constant 0 : index
    %53 = vector.load %arg4[%c0_8, %c0_9] : memref<4x1xf32, #tpu.memory_space<vmem>>, vector<4x1xf32>
    %54 = vector.broadcast %53 : vector<4x1xf32> to vector<4x384xf32>
    %55 = arith.mulf %52, %54 : vector<4x384xf32>
    %c0_10 = arith.constant 0 : index
    %c0_11 = arith.constant 0 : index
    %56 = vector.load %arg5[%c0_10, %c0_11] : memref<4x1xf32, #tpu.memory_space<vmem>>, vector<4x1xf32>
    %57 = vector.broadcast %56 : vector<4x1xf32> to vector<4x384xf32>
    %58 = arith.addf %55, %57 : vector<4x384xf32>
    %c0_12 = arith.constant 0 : index
    %c0_13 = arith.constant 0 : index
    %c0_14 = arith.constant 0 : index
    %59 = vector.load %arg6[%c0_12, %c0_13, %c0_14] : memref<1x4x384xf32, #tpu.memory_space<vmem>>, vector<1x4x384xf32>
    %60 = vector.shape_cast %59 : vector<1x4x384xf32> to vector<4x384xf32>
    %61 = vector.shape_cast %58 : vector<4x384xf32> to vector<1x4x384xf32>
    tpu.vector_store %arg6[%c0_12, %c0_13, %c0_14], %61 {strides = array<i32>} : memref<1x4x384xf32, #tpu.memory_space<vmem>>, vector<1x4x384xf32>,
    return
  }
  func.func @transform_0(%arg0: i32) -> (i32, i32, i32) {
    %c0_i32 = arith.constant 0 : i32
    %c0_i32_0 = arith.constant 0 : i32
    %c0_i32_1 = arith.constant 0 : i32
    return %arg0, %c0_i32, %c0_i32_0 : i32, i32, i32
  }
  func.func @transform_1(%arg0: i32) -> (i32, i32) {
    %c0_i32 = arith.constant 0 : i32
    %c0_i32_0 = arith.constant 0 : i32
    %c0_i32_1 = arith.constant 0 : i32
    return %c0_i32, %c0_i32_0 : i32, i32
  }
  func.func @transform_2(%arg0: i32) -> (i32, i32) {
    %c0_i32 = arith.constant 0 : i32
    %c0_i32_0 = arith.constant 0 : i32
    %c0_i32_1 = arith.constant 0 : i32
    return %c0_i32, %c0_i32_0 : i32, i32
  }
  func.func @transform_3(%arg0: i32) -> (i32, i32) {
    %c0_i32 = arith.constant 0 : i32
    %c0_i32_0 = arith.constant 0 : i32
    %c0_i32_1 = arith.constant 0 : i32
    return %c0_i32, %c0_i32_0 : i32, i32
  }
  func.func @transform_4(%arg0: i32) -> (i32, i32) {
    %c0_i32 = arith.constant 0 : i32
    %c0_i32_0 = arith.constant 0 : i32
    %c0_i32_1 = arith.constant 0 : i32
    return %c0_i32, %c0_i32_0 : i32, i32
  }
  func.func @transform_5(%arg0: i32) -> (i32, i32, i32) {
    %c0_i32 = arith.constant 0 : i32
    %c0_i32_0 = arith.constant 0 : i32
    %c0_i32_1 = arith.constant 0 : i32
    return %arg0, %c0_i32, %c0_i32_0 : i32, i32, i32
  }
}

</mosaic_0001>

<llo_original>
// kernel: tpu_custom_call.1
$region0: #{tpu_custom_call.1}
  #allocation0 [shape = 'u32[]', space=smem, size = 0x4, offset = 0x4, fixed_abs, tag = 'smem constant byte address 0x4 - core index']
  #allocation1 [shape = 'u32[72,128]{1,0:T(1,128)}', space=vmem, size = 0x9000, scoped, tag = 'internal scratch']
  %s0 = inlined_call_operand.hbm [shape: f32[2,4,512], index: 0, kind: input, shape index: {}]
  %s1 = inlined_call_operand.vmem [shape: f32[4,9], index: 1, kind: input, shape index: {}]
  %s2 = inlined_call_operand.vmem [shape: f32[4,4], index: 2, kind: input, shape index: {}]
  %s3 = inlined_call_operand.vmem [shape: f32[4,1], index: 3, kind: input, shape index: {}]
  %s4 = inlined_call_operand.vmem [shape: f32[4,1], index: 4, kind: input, shape index: {}]
  %s5 = inlined_call_operand.hbm [shape: f32[2,4,384], index: 5, kind: output, shape index: {}]
  %s6 = sld [smem:[#allocation0]]
  $region57: #{tpu_custom_call.1} parent=0
    _
  %s8 = ssub.s32 1, %s6
  %s9 = scalar_select 0, %s8, %s6
  $region1: #{tpu_custom_call.1} parent=0
    #allocation2 [shape = 'u8[16384]{0}', space=vmem, size = 0x4000, scoped, tag = 'input window, operand 0']
    #allocation3 [shape = 's32[2]{0}', space=sflag, size = 0x8, scoped, tag = 'scoped memory for tpu_custom_call.1']
    #allocation4 [shape = 's32[2]{0}', space=sflag, size = 0x8, scoped, tag = 'scoped memory for tpu_custom_call.1']
    #allocation5 [shape = 'u8[12288]{0}', space=vmem, size = 0x3000, scoped, tag = 'output window, operand 0']
    %10 = vsyncpa [#allocation3], 0
    %s11 = scalar_lea.sflag [#allocation3], 1
    %12 = vsyncpa %s11, 0
    %13 = vsyncpa [#allocation4], 0
    %s14 = scalar_lea.sflag [#allocation4], 1
    %15 = vsyncpa %s14, 0
    loop: start=0, step=1, limit=4
    $region2: #{tpu_custom_call.1} parent=1 // loop_pre_header
      _
    $region3: #{tpu_custom_call.1} parent=1 // loop_header
      %s17 = sphi 0, %s21
      %p18 = scmp.ge.s32.totalorder %s17, 4
      %s27 = sphi 0, %s29
      %s30 = sphi 0, %s27
      %s31 = sphi 0, %s30
      %s47 = sphi 0, %s31
      %s51 = sphi 0, %s51
      %s53 = sphi 0, %s51
      %s54 = sphi 0, %s53
      %s68 = sphi 0, %s54
      %s72 = sphi 0, %s72
      %s74 = sphi 0, %s72
      %s75 = sphi 0, %s74
      %s89 = sphi 0, %s75
      %s93 = sphi 0, %s93
      %s95 = sphi 0, %s93
      %s96 = sphi 0, %s95
      %s110 = sphi 0, %s96
      %s114 = sphi 0, %s114
      %s116 = sphi 0, %s114
      %s117 = sphi 0, %s116
      %s131 = sphi 0, %s117
      %s137 = sphi 0, %s139
      %s140 = sphi 0, %s137
      %s141 = sphi 0, %s140
      %s157 = sphi 0, %s141
    $region4: #{tpu_custom_call.1} parent=1 // loop_header_branch
      %20 = sbr.rel (%p18) target = $region8
    $region5: #{tpu_custom_call.1} parent=1 // loop_body
      %s22 = ssub.s32 %s17, 1
      %s23 = ssub.s32 %s17, 2
      %s24 = sadd.s32 %s17, 1
      %s25 = ssub.s32 %s17, %s24
      %p26 = scmp.eq.s32.totalorder %s25, 0
      %s28 = sadd.s32 %s27, 1
      %s29 = scalar_select %p26, %s27, %s28
      %p32 = pneg %p26
      %p33 = scmp.eq.s32.totalorder %s17, 1
      %p34 = por %p32, %p33
      %p35 = scmp.ne.s32.totalorder %s27, %s30
      %p36 = scmp.eq.s32.totalorder %s17, 0
      %p37 = por %p35, %p36
      %p38 = scmp.ne.s32.totalorder %s27, %s30
      %p39 = scmp.eq.s32.totalorder %s22, 1
      %p40 = por %p38, %p39
      %p41 = scmp.ne.s32.totalorder %s30, %s31
      %p42 = scmp.eq.s32.totalorder %s22, 0
      %p43 = por %p41, %p42
      %p44 = scmp.ne.s32.totalorder %s30, %s31
      %p45 = scmp.eq.s32.totalorder %s23, 1
      %p46 = por %p44, %p45
      %p48 = scmp.ne.s32.totalorder %s31, %s47
      %p49 = scmp.eq.s32.totalorder %s23, 0
      %p50 = por %p48, %p49
      %s52 = sadd.s32 %s51, 1
      %p55 = scmp.eq.s32.totalorder %s17, 1
      %p56 = scmp.ne.s32.totalorder %s51, %s53
      %p57 = scmp.eq.s32.totalorder %s17, 0
      %p58 = por %p56, %p57
      %p59 = scmp.ne.s32.totalorder %s51, %s53
      %p60 = scmp.eq.s32.totalorder %s22, 1
      %p61 = por %p59, %p60
      %p62 = scmp.ne.s32.totalorder %s53, %s54
      %p63 = scmp.eq.s32.totalorder %s22, 0
      %p64 = por %p62, %p63
      %p65 = scmp.ne.s32.totalorder %s53, %s54
      %p66 = scmp.eq.s32.totalorder %s23, 1
      %p67 = por %p65, %p66
      %p69 = scmp.ne.s32.totalorder %s54, %s68
      %p70 = scmp.eq.s32.totalorder %s23, 0
      %p71 = por %p69, %p70
      %s73 = sadd.s32 %s72, 1
      %p76 = scmp.eq.s32.totalorder %s17, 1
      %p77 = scmp.ne.s32.totalorder %s72, %s74
      %p78 = scmp.eq.s32.totalorder %s17, 0
      %p79 = por %p77, %p78
      %p80 = scmp.ne.s32.totalorder %s72, %s74
      %p81 = scmp.eq.s32.totalorder %s22, 1
      %p82 = por %p80, %p81
      %p83 = scmp.ne.s32.totalorder %s74, %s75
      %p84 = scmp.eq.s32.totalorder %s22, 0
      %p85 = por %p83, %p84
      %p86 = scmp.ne.s32.totalorder %s74, %s75
      %p87 = scmp.eq.s32.totalorder %s23, 1
      %p88 = por %p86, %p87
      %p90 = scmp.ne.s32.totalorder %s75, %s89
      %p91 = scmp.eq.s32.totalorder %s23, 0
      %p92 = por %p90, %p91
      %s94 = sadd.s32 %s93, 1
      %p97 = scmp.eq.s32.totalorder %s17, 1
      %p98 = scmp.ne.s32.totalorder %s93, %s95
      %p99 = scmp.eq.s32.totalorder %s17, 0
      %p100 = por %p98, %p99
      %p101 = scmp.ne.s32.totalorder %s93, %s95
      %p102 = scmp.eq.s32.totalorder %s22, 1
      %p103 = por %p101, %p102
      %p104 = scmp.ne.s32.totalorder %s95, %s96
      %p105 = scmp.eq.s32.totalorder %s22, 0
      %p106 = por %p104, %p105
      %p107 = scmp.ne.s32.totalorder %s95, %s96
      %p108 = scmp.eq.s32.totalorder %s23, 1
      %p109 = por %p107, %p108
      %p111 = scmp.ne.s32.totalorder %s96, %s110
      %p112 = scmp.eq.s32.totalorder %s23, 0
      %p113 = por %p111, %p112
      %s115 = sadd.s32 %s114, 1
      %p118 = scmp.eq.s32.totalorder %s17, 1
      %p119 = scmp.ne.s32.totalorder %s114, %s116
      %p120 = scmp.eq.s32.totalorder %s17, 0
      %p121 = por %p119, %p120
      %p122 = scmp.ne.s32.totalorder %s114, %s116
      %p123 = scmp.eq.s32.totalorder %s22, 1
      %p124 = por %p122, %p123
      %p125 = scmp.ne.s32.totalorder %s116, %s117
      %p126 = scmp.eq.s32.totalorder %s22, 0
      %p127 = por %p125, %p126
      %p128 = scmp.ne.s32.totalorder %s116, %s117
      %p129 = scmp.eq.s32.totalorder %s23, 1
      %p130 = por %p128, %p129
      %p132 = scmp.ne.s32.totalorder %s117, %s131
      %p133 = scmp.eq.s32.totalorder %s23, 0
      %p134 = por %p132, %p133
      %s135 = ssub.s32 %s17, %s24
      %p136 = scmp.eq.s32.totalorder %s135, 0
      %s138 = sadd.s32 %s137, 1
      %s139 = scalar_select %p136, %s137, %s138
      %p142 = pneg %p136
      %p143 = scmp.eq.s32.totalorder %s17, 1
      %p144 = por %p142, %p143
      %p145 = scmp.ne.s32.totalorder %s137, %s140
      %p146 = scmp.eq.s32.totalorder %s17, 0
      %p147 = por %p145, %p146
      %p148 = scmp.ne.s32.totalorder %s137, %s140
      %p149 = scmp.eq.s32.totalorder %s22, 1
      %p150 = por %p148, %p149
      %p151 = scmp.ne.s32.totalorder %s140, %s141
      %p152 = scmp.eq.s32.totalorder %s22, 0
      %p153 = por %p151, %p152
      %p154 = scmp.ne.s32.totalorder %s140, %s141
      %p155 = scmp.eq.s32.totalorder %s23, 1
      %p156 = por %p154, %p155
      %p158 = scmp.ne.s32.totalorder %s141, %s157
      %p159 = scmp.eq.s32.totalorder %s23, 0
      %p160 = por %p158, %p159
      %p161 = scmp.le.s32.totalorder 1, %s17
      %p162 = scmp.lt.s32.totalorder %s17, 3
      %p163 = pnand %p161, %p162
      %p164 = pneg %p163
      // Predicated region
      $region9: #{tpu_custom_call.1} parent=5 // pred_check
        _
      $region10: #{tpu_custom_call.1} parent=5 // pred_check_branch
        %166 = sbr.rel (%p163) target = $region12
      $region11: #{tpu_custom_call.1} parent=5 // pred_region
        %s167 = ssub.s32 %s17, 1
        // Predicated region
        $region13: #{tpu_custom_call.1} parent=11 // pred_check
          %p168 = pneg %p64
        $region14: #{tpu_custom_call.1} parent=11 // pred_check_branch
          %170 = sbr.rel (%p168) target = $region16
        $region15: #{tpu_custom_call.1} parent=11 // pred_region
          _
        $region16: #{tpu_custom_call.1} parent=11 // pred_fallthru
          _
        // Predicated region
        $region17: #{tpu_custom_call.1} parent=11 // pred_check
          %p171 = pneg %p85
        $region18: #{tpu_custom_call.1} parent=11 // pred_check_branch
          %173 = sbr.rel (%p171) target = $region20
        $region19: #{tpu_custom_call.1} parent=11 // pred_region
          _
        $region20: #{tpu_custom_call.1} parent=11 // pred_fallthru
          _
        // Predicated region
        $region21: #{tpu_custom_call.1} parent=11 // pred_check
          %p174 = pneg %p106
        $region22: #{tpu_custom_call.1} parent=11 // pred_check_branch
          %176 = sbr.rel (%p174) target = $region24
        $region23: #{tpu_custom_call.1} parent=11 // pred_region
          _
        $region24: #{tpu_custom_call.1} parent=11 // pred_fallthru
          _
        // Predicated region
        $region25: #{tpu_custom_call.1} parent=11 // pred_check
          %p177 = pneg %p127
        $region26: #{tpu_custom_call.1} parent=11 // pred_check_branch
          %179 = sbr.rel (%p177) target = $region28
        $region27: #{tpu_custom_call.1} parent=11 // pred_region
          _
        $region28: #{tpu_custom_call.1} parent=11 // pred_fallthru
          _
      $region12: #{tpu_custom_call.1} parent=5 // pred_fallthru
        _
      %p180 = scmp.lt.s32.totalorder %s17, 2
      // Predicated region
      $region29: #{tpu_custom_call.1} parent=5 // pred_check
        %p181 = pneg %p180
      $region30: #{tpu_custom_call.1} parent=5 // pred_check_branch
        %183 = sbr.rel (%p181) target = $region32
      $region31: #{tpu_custom_call.1} parent=5 // pred_region
        // Predicated region
        $region33: #{tpu_custom_call.1} parent=31 // pred_check
          %p184 = pneg %p37
        $region34: #{tpu_custom_call.1} parent=31 // pred_check_branch
          %186 = sbr.rel (%p184) target = $region36
        $region35: #{tpu_custom_call.1} parent=31 // pred_region
          %s187 = sand.u32 %s27, 1
          %s188 = scalar_lea.sflag [#allocation3], %s187
          %s189 = sand.u32 %s27, 1
          %s190 = smul.addr %s189, 16
          %s191 = scalar_lea.vmem [#allocation2], %s190
          %193 = vsyncadd %s188, 0
          %s194 = smul.addr %s17, 4
          %s195 = smul.addr %s194, 4
          %s196 = scalar_lea.hbm %s0, %s195
          %s198 = sshll.u32 %s196, 4
          %s199 = int_to_ptr.hbm [resolvable:$true] %s198
          %s200 = sshll.u32 %s191, 4
          %s201 = int_to_ptr.vmem [resolvable:$true] %s200
          %203 = dma.hbm_to_vmem [thread:$0]  %s199, 256, %s201, %s188
        $region36: #{tpu_custom_call.1} parent=31 // pred_fallthru
          _
      $region32: #{tpu_custom_call.1} parent=5 // pred_fallthru
        _
      %p204 = scmp.le.s32.totalorder 1, %s17
      %p205 = scmp.lt.s32.totalorder %s17, 3
      %p206 = pnand %p204, %p205
      %p207 = pneg %p206
      // Predicated region
      $region37: #{tpu_custom_call.1} parent=5 // pred_check
        _
      $region38: #{tpu_custom_call.1} parent=5 // pred_check_branch
        %209 = sbr.rel (%p206) target = $region40
      $region39: #{tpu_custom_call.1} parent=5 // pred_region
        %s210 = ssub.s32 %s17, 1
        %s211 = sand.u32 %s30, 1
        %s212 = scalar_lea.sflag [#allocation3], %s211
        %s213 = sand.u32 %s30, 1
        %s214 = smul.addr %s213, 16
        %s215 = scalar_lea.vmem [#allocation2], %s214
        // Predicated region
        $region41: #{tpu_custom_call.1} parent=39 // pred_check
          %p216 = pneg %p43
        $region42: #{tpu_custom_call.1} parent=39 // pred_check_branch
          %218 = sbr.rel (%p216) target = $region44
        $region43: #{tpu_custom_call.1} parent=39 // pred_region
          %220 = dma.done %s212, 256
        $region44: #{tpu_custom_call.1} parent=39 // pred_fallthru
          _
        %s221 = sand.u32 %s30, 1
        %s222 = scalar_lea.sflag [#allocation3], %s221
        %s223 = sand.u32 %s30, 1
        %s224 = smul.addr %s223, 16
        %s225 = scalar_lea.vmem [#allocation2], %s224
        %p226 = pneg %p43
        %p227 = pneg %p40
        %p228 = pneg %p64
        %p229 = pneg %p61
        %p230 = pneg %p85
        %p231 = pneg %p82
        %p232 = pneg %p106
        %p233 = pneg %p103
        %p234 = pneg %p127
        %p235 = pneg %p124
        %p236 = pneg %p153
        %p237 = pneg %p150
        %s238 = sand.u32 %s140, 1
        %s239 = scalar_lea.sflag [#allocation4], %s238
        %s240 = sand.u32 %s140, 1
        %s241 = smul.addr %s240, 12
        %s242 = scalar_lea.vmem [#allocation5], %s241
        %v243 = vld [vmem:[%s215] sm:$0xff]
        %v244 = vld [vmem:[%s215 + $0x8] sm:$0xff]
        %v245 = vmax.f32 %v243, 0.0
        %v246 = vmax.f32 %v244, 0.0
        %v247 = vld [vmem:[%s1] sm:$0xf]
        %249 = vset.pattern.permute.xlu0 0
        %250 = vperm.xlu0 %249, %v247
        %v251 = vpop.permute.xlu0 %250
        %v253 = vunpack.c.l.s4 839922192
        %v254 = vunpack.c.0.s8 %v253
        %v255 = vperm.slane %v251, %v254
        %v257 = vmul.f32 %v245, %v255
        %v258 = vmul.f32 %v246, %v255
        %v259 = vadd.f32 %v257, 0.0
        %v260 = vadd.f32 %v258, 0.0
        %261 = vset.pattern.permute.xlu0 1
        %262 = vperm.xlu0 %261, %v247
        %v263 = vpop.permute.xlu0 %262
        %v265 = vunpack.c.l.s4 839922192
        %v266 = vunpack.c.0.s8 %v265
        %v267 = vperm.slane %v263, %v266
        %v269 = vmul.f32 %v245, %v267
        %v270 = vmul.f32 %v246, %v267
        %273 = vrot.lane.b32.xlu0 %v269, 127
        %v274 = vpop.permute.xlu0 %273
        %275 = vrot.lane.b32.xlu0 %v270, 127
        %v276 = vpop.permute.xlu0 %275
        %v277 = vrot.slane %v274, 4
        %v278 = vrot.slane %v276, 4
        %vm279 = vcmask 1043456
        %v280 = vsel %vm279, %v277, %v278
        %vm281 = vcmask 1039360
        %v282 = vsel %vm281, %v274, %v280
        %v283 = vsel %vm281, %v276, %v278
        %v286 = vadd.f32 %v259, %v282
        %v287 = vadd.f32 %v260, %v283
        %288 = vset.pattern.permute.xlu0 2
        %289 = vperm.xlu0 %288, %v247
        %v290 = vpop.permute.xlu0 %289
        %v292 = vunpack.c.l.s4 839922192
        %v293 = vunpack.c.0.s8 %v292
        %v294 = vperm.slane %v290, %v293
        %v296 = vmul.f32 %v245, %v294
        %v297 = vmul.f32 %v246, %v294
        %300 = vrot.lane.b32.xlu0 %v296, 126
        %v301 = vpop.permute.xlu0 %300
        %302 = vrot.lane.b32.xlu0 %v297, 126
        %v303 = vpop.permute.xlu0 %302
        %v304 = vrot.slane %v301, 4
        %v305 = vrot.slane %v303, 4
        %v306 = vsel %vm279, %v304, %v305
        %vm307 = vcmask 1031168
        %v308 = vsel %vm307, %v301, %v306
        %v309 = vsel %vm307, %v303, %v305
        %v312 = vadd.f32 %v286, %v308
        %v313 = vadd.f32 %v287, %v309
        %314 = vset.pattern.permute.xlu0 3
        %315 = vperm.xlu0 %314, %v247
        %v316 = vpop.permute.xlu0 %315
        %v318 = vunpack.c.l.s4 839922192
        %v319 = vunpack.c.0.s8 %v318
        %v320 = vperm.slane %v316, %v319
        %v322 = vmul.f32 %v245, %v320
        %v323 = vmul.f32 %v246, %v320
        %326 = vrot.lane.b32.xlu0 %v322, 110
        %v327 = vpop.permute.xlu0 %326
        %328 = vrot.lane.b32.xlu0 %v323, 110
        %v329 = vpop.permute.xlu0 %328
        %v330 = vrot.slane %v327, 4
        %v331 = vrot.slane %v329, 4
        %v332 = vsel %vm279, %v330, %v331
        %vm333 = vcmask 900096
        %v334 = vsel %vm333, %v327, %v332
        %v335 = vsel %vm333, %v329, %v331
        %v338 = vadd.f32 %v312, %v334
        %v339 = vadd.f32 %v313, %v335
        %340 = vset.pattern.permute.xlu0 4
        %341 = vperm.xlu0 %340, %v247
        %v342 = vpop.permute.xlu0 %341
        %v344 = vunpack.c.l.s4 839922192
        %v345 = vunpack.c.0.s8 %v344
        %v346 = vperm.slane %v342, %v345
        %v348 = vmul.f32 %v245, %v346
        %v349 = vmul.f32 %v246, %v346
        %352 = vrot.lane.b32.xlu0 %v348, 109
        %v353 = vpop.permute.xlu0 %352
        %354 = vrot.lane.b32.xlu0 %v349, 109
        %v355 = vpop.permute.xlu0 %354
        %v356 = vrot.slane %v353, 4
        %v357 = vrot.slane %v355, 4
        %v358 = vsel %vm279, %v356, %v357
        %vm359 = vcmask 891904
        %v360 = vsel %vm359, %v353, %v358
        %v361 = vsel %vm359, %v355, %v357
        %v364 = vadd.f32 %v338, %v360
        %v365 = vadd.f32 %v339, %v361
        %366 = vset.pattern.permute.xlu0 5
        %367 = vperm.xlu0 %366, %v247
        %v368 = vpop.permute.xlu0 %367
        %v370 = vunpack.c.l.s4 839922192
        %v371 = vunpack.c.0.s8 %v370
        %v372 = vperm.slane %v368, %v371
        %v374 = vmul.f32 %v245, %v372
        %v375 = vmul.f32 %v246, %v372
        %378 = vrot.lane.b32.xlu0 %v374, 108
        %v379 = vpop.permute.xlu0 %378
        %380 = vrot.lane.b32.xlu0 %v375, 108
        %v381 = vpop.permute.xlu0 %380
        %v382 = vrot.slane %v379, 4
        %v383 = vrot.slane %v381, 4
        %v384 = vsel %vm279, %v382, %v383
        %vm385 = vcmask 883712
        %v386 = vsel %vm385, %v379, %v384
        %v387 = vsel %vm385, %v381, %v383
        %v390 = vadd.f32 %v364, %v386
        %v391 = vadd.f32 %v365, %v387
        %392 = vset.pattern.permute.xlu0 6
        %393 = vperm.xlu0 %392, %v247
        %v394 = vpop.permute.xlu0 %393
        %v396 = vunpack.c.l.s4 839922192
        %v397 = vunpack.c.0.s8 %v396
        %v398 = vperm.slane %v394, %v397
        %v400 = vmul.f32 %v245, %v398
        %v401 = vmul.f32 %v246, %v398
        %404 = vrot.lane.b32.xlu0 %v400, 92
        %v405 = vpop.permute.xlu0 %404
        %406 = vrot.lane.b32.xlu0 %v401, 92
        %v407 = vpop.permute.xlu0 %406
        %v408 = vrot.slane %v405, 4
        %v409 = vrot.slane %v407, 4
        %v410 = vsel %vm279, %v408, %v409
        %vm411 = vcmask 752640
        %v412 = vsel %vm411, %v405, %v410
        %v413 = vsel %vm411, %v407, %v409
        %v416 = vadd.f32 %v390, %v412
        %v417 = vadd.f32 %v391, %v413
        %418 = vset.pattern.permute.xlu0 7
        %419 = vperm.xlu0 %418, %v247
        %v420 = vpop.permute.xlu0 %419
        %v422 = vunpack.c.l.s4 839922192
        %v423 = vunpack.c.0.s8 %v422
        %v424 = vperm.slane %v420, %v423
        %v426 = vmul.f32 %v245, %v424
        %v427 = vmul.f32 %v246, %v424
        %430 = vrot.lane.b32.xlu0 %v426, 91
        %v431 = vpop.permute.xlu0 %430
        %432 = vrot.lane.b32.xlu0 %v427, 91
        %v433 = vpop.permute.xlu0 %432
        %v434 = vrot.slane %v431, 4
        %v435 = vrot.slane %v433, 4
        %v436 = vsel %vm279, %v434, %v435
        %vm437 = vcmask 744448
        %v438 = vsel %vm437, %v431, %v436
        %v439 = vsel %vm437, %v433, %v435
        %v442 = vadd.f32 %v416, %v438
        %v443 = vadd.f32 %v417, %v439
        %444 = vset.pattern.permute.xlu0 8
        %445 = vperm.xlu0 %444, %v247
        %v446 = vpop.permute.xlu0 %445
        %v448 = vunpack.c.l.s4 839922192
        %v449 = vunpack.c.0.s8 %v448
        %v450 = vperm.slane %v446, %v449
        %v452 = vmul.f32 %v245, %v450
        %v453 = vmul.f32 %v246, %v450
        %456 = vrot.lane.b32.xlu0 %v452, 90
        %v457 = vpop.permute.xlu0 %456
        %458 = vrot.lane.b32.xlu0 %v453, 90
        %v459 = vpop.permute.xlu0 %458
        %v460 = vrot.slane %v457, 4
        %v461 = vrot.slane %v459, 4
        %v462 = vsel %vm279, %v460, %v461
        %vm463 = vcmask 736256
        %v464 = vsel %vm463, %v457, %v462
        %v465 = vsel %vm463, %v459, %v461
        %v468 = vadd.f32 %v442, %v464
        %v469 = vadd.f32 %v443, %v465
        %v470 = vld [vmem:[%s2] sm:$0xf]
        %473 = vst [vmem:[#allocation1] ss:$2 sm:$0xff] %v468
        %s474 = scalar_lea.vmem [#allocation1], 16
        %475 = vst [vmem:[%s474] ss:$2 sm:$0xff] %v469
        %v476 = vld.sshfl [vmem:[#allocation1] sm:$0xff pattern:$0x75316420]
        %v477 = vld.sshfl [vmem:[#allocation1 + $0x8] sm:$0xff pattern:$0x75316420]
        %v478 = vld.sshfl [vmem:[#allocation1 + $0x10] sm:$0xff pattern:$0x75316420]
        %vm479 = vcmask 31744
        %v481 = vsel %vm479, %v470, 0
        %v483 = vsel %vm279, %v476, 0
        %v485 = vsel %vm279, %v477, 0
        %v487 = vsel %vm279, %v478, 0
        %489 = vmatpush.msra.mxu0 0.0
        %490 = vmatpush.msra.mxu0 0.0
        %491 = vmatpush.msra.mxu0 0.0
        %492 = vmatpush.msra.mxu0 0.0
        %493 = vmatpush.msra.mxu0 0.0
        %494 = vmatpush.msra.mxu0 0.0
        %495 = vmatpush.msra.mxu0 0.0
        %496 = vmatpush.msra.mxu0 0.0
        %497 = vmatpush.msra.mxu0 0.0
        %498 = vmatpush.msra.mxu0 0.0
        %499 = vmatpush.msra.mxu0 0.0
        %500 = vmatpush.msra.mxu0 0.0
        %501 = vmatpush.msra.mxu0 0.0
        %502 = vmatpush.msra.mxu0 0.0
        %503 = vmatpush.msra.mxu0 0.0
        %504 = vmatpush.msra.mxu0 %v483
        %505 = vmatmul.f32.gmra.mxu0 %v481
        %v506 = vpop.f32.mrf.mxu0
        %v507 = vadd.f32 0.0, %v506
        %508 = vdwg.mxu0
        %509 = vmatpush.msra.mxu0 0.0
        %510 = vmatpush.msra.mxu0 0.0
        %511 = vmatpush.msra.mxu0 0.0
        %512 = vmatpush.msra.mxu0 0.0
        %513 = vmatpush.msra.mxu0 0.0
        %514 = vmatpush.msra.mxu0 0.0
        %515 = vmatpush.msra.mxu0 0.0
        %516 = vmatpush.msra.mxu0 0.0
        %517 = vmatpush.msra.mxu0 0.0
        %518 = vmatpush.msra.mxu0 0.0
        %519 = vmatpush.msra.mxu0 0.0
        %520 = vmatpush.msra.mxu0 0.0
        %521 = vmatpush.msra.mxu0 0.0
        %522 = vmatpush.msra.mxu0 0.0
        %523 = vmatpush.msra.mxu0 0.0
        %524 = vmatpush.msra.mxu0 %v485
        %525 = vmatmul.f32.gmra.mxu0 %v481
        %v526 = vpop.f32.mrf.mxu0
        %v527 = vadd.f32 0.0, %v526
        %528 = vdwg.mxu0
        %529 = vmatpush.msra.mxu0 0.0
        %530 = vmatpush.msra.mxu0 0.0
        %531 = vmatpush.msra.mxu0 0.0
        %532 = vmatpush.msra.mxu0 0.0
        %533 = vmatpush.msra.mxu0 0.0
        %534 = vmatpush.msra.mxu0 0.0
        %535 = vmatpush.msra.mxu0 0.0
        %536 = vmatpush.msra.mxu0 0.0
        %537 = vmatpush.msra.mxu0 0.0
        %538 = vmatpush.msra.mxu0 0.0
        %539 = vmatpush.msra.mxu0 0.0
        %540 = vmatpush.msra.mxu0 0.0
        %541 = vmatpush.msra.mxu0 0.0
        %542 = vmatpush.msra.mxu0 0.0
        %543 = vmatpush.msra.mxu0 0.0
        %544 = vmatpush.msra.mxu0 %v487
        %545 = vmatmul.f32.gmra.mxu0 %v481
        %v546 = vpop.f32.mrf.mxu0
        %v547 = vadd.f32 0.0, %v546
        %548 = vdwg.mxu0
        %v549 = vld [vmem:[%s3] sm:$0xf]
        %551 = vset.pattern.permute.xlu0 0
        %552 = vperm.xlu0 %551, %v549
        %v553 = vpop.permute.xlu0 %552
        %v555 = vmul.f32 %v507, %v553
        %v556 = vmul.f32 %v527, %v553
        %v557 = vmul.f32 %v547, %v553
        %v558 = vld [vmem:[%s4] sm:$0xf]
        %560 = vset.pattern.permute.xlu0 0
        %561 = vperm.xlu0 %560, %v558
        %v562 = vpop.permute.xlu0 %561
        %v564 = vadd.f32 %v555, %v562
        %v565 = vadd.f32 %v556, %v562
        %v566 = vadd.f32 %v557, %v562
        %v569 = vrot.slane %v565, 4
        %v570 = vsel %vm279, %v564, %v569
        %572 = vst [vmem:[%s242] sm:$0xff] %v570
        %573 = vst [vmem:[%s242 + $0x8] sm:$0xf] %v566
        %s574 = sand.u32 %s140, 1
        %s575 = scalar_lea.sflag [#allocation4], %s574
        %s576 = sand.u32 %s140, 1
        %s577 = smul.addr %s576, 12
        %s578 = scalar_lea.vmem [#allocation5], %s577
        // Predicated region
        $region45: #{tpu_custom_call.1} parent=39 // pred_check
          %p579 = pneg %p150
        $region46: #{tpu_custom_call.1} parent=39 // pred_check_branch
          %581 = sbr.rel (%p579) target = $region48
        $region47: #{tpu_custom_call.1} parent=39 // pred_region
          %583 = vsyncadd %s575, 0
          %s584 = smul.addr %s22, 3
          %s585 = smul.addr %s584, 4
          %s586 = scalar_lea.hbm %s5, %s585
          %s588 = sshll.u32 %s578, 4
          %s589 = int_to_ptr.vmem [resolvable:$true] %s588
          %s590 = sshll.u32 %s586, 4
          %s591 = int_to_ptr.hbm [resolvable:$true] %s590
          %593 = dma.vmem_to_hbm [thread:$0]  %s589, 192, %s591, %s575
        $region48: #{tpu_custom_call.1} parent=39 // pred_fallthru
          _
      $region40: #{tpu_custom_call.1} parent=5 // pred_fallthru
        _
      %p594 = scmp.le.s32.totalorder 2, %s17
      // Predicated region
      $region49: #{tpu_custom_call.1} parent=5 // pred_check
        %p595 = pneg %p594
      $region50: #{tpu_custom_call.1} parent=5 // pred_check_branch
        %597 = sbr.rel (%p595) target = $region52
      $region51: #{tpu_custom_call.1} parent=5 // pred_region
        %s598 = ssub.s32 %s17, 2
        // Predicated region
        $region53: #{tpu_custom_call.1} parent=51 // pred_check
          %p599 = pneg %p156
        $region54: #{tpu_custom_call.1} parent=51 // pred_check_branch
          %601 = sbr.rel (%p599) target = $region56
        $region55: #{tpu_custom_call.1} parent=51 // pred_region
          %s602 = sand.u32 %s141, 1
          %s603 = scalar_lea.sflag [#allocation4], %s602
          %s604 = sand.u32 %s141, 1
          %s605 = smul.addr %s604, 12
          %s606 = scalar_lea.vmem [#allocation5], %s605
          %608 = dma.done %s603, 192
        $region56: #{tpu_custom_call.1} parent=51 // pred_fallthru
          _
      $region52: #{tpu_custom_call.1} parent=5 // pred_fallthru
        _
    $region6: #{tpu_custom_call.1} parent=1 // loop_footer
      %s21 = sadd.s32 1, %s17
    $region7: #{tpu_custom_call.1} parent=1 // loop_footer_branch
      %16 = sbr.rel target = $region3
    $region8: #{tpu_custom_call.1} parent=1 // loop_exit
      _
    %609 = vsyncpa [#allocation3], 1
    %s610 = scalar_lea.sflag [#allocation3], 1
    %611 = vsyncpa %s610, 1
    %612 = vsyncpa [#allocation4], 1
    %s613 = scalar_lea.sflag [#allocation4], 1
    %614 = vsyncpa %s613, 1

</llo_original>
